<compile_context>
chip_gen: v7x
topology: tpu7x:2x2x1
jax: 0.10.0
libtpu: 0.0.40
codegen_flags: <defaults>
</compile_context>

<pallas_src>
import jax
import jax.numpy as jnp
from jax import lax
from jax.experimental import pallas as pl
from jax.experimental.pallas import tpu as pltpu

LANES = 128


def _round_up(x: int, m: int) -> int:
    return ((x + m - 1) // m) * m


def _cdiv(a: int, b: int) -> int:
    return -(-a // b)


def _chip_config():
    """Returns (max_row_tile, vmem_limit_bytes_or_None, num_tensorcores)."""
    try:
        kind = jax.devices()[0].device_kind.lower()
    except Exception:
        kind = ""
    if "v7" in kind:
        # 2 TCs; only 64 MiB physical VMEM -> 4 MiB/input blocks, limit raised.
        return 8192, 40 << 20, 2
    if "v6" in kind:
        # 128 MiB physical VMEM, ~1.4 TB/s -> 8 MiB/input blocks.
        return 16384, 64 << 20, 1
    if "v5" in kind and ("lite" in kind or "v5e" in kind):
        # 2 MiB/input blocks fit under the 16 MiB scoped-VMEM default.
        return 4096, None, 1
    # Unknown / v4 / v5p: conservative middle ground.
    return 8192, 40 << 20, 1


def _make_kernel(*, n_steps, n_blocks, row_tile, ch, rem, valid_last,
                 last_partial):
    """Builds the per-block squared-diff accumulation kernel (static closure)."""
    full_blocks = n_blocks - 1 if last_partial else n_blocks
    n_full_chunks = row_tile // ch
    n_valid_chunks = _cdiv(valid_last, ch)

    def kernel(gt_ref, p_ref, out_ref):
        i = pl.program_id(1)
        gidx = pl.program_id(0) * n_steps + i  # global block index

        @pl.when(i == 0)
        def _():
            out_ref[...] = jnp.zeros_like(out_ref)

        def sq_chunk(r0, nrows):
            # Cast in-kernel: inputs travel HBM->VMEM in their native dtype.
            g = gt_ref[pl.ds(r0, nrows), :].astype(jnp.float32)
            p = p_ref[pl.ds(r0, nrows), :].astype(jnp.float32)
            d = g - p
            return d * d

        if full_blocks > 0:
            @pl.when(gidx < full_blocks)
            def _():
                # Steady state: mask-free (ch,128)-row chunks folded into a
                # (ch,128) register carry (ch/8 independent vreg chains), no
                # multi-MiB traced temporaries, single VMEM update at the end.
                def body(k, acc):
                    r0 = pl.multiple_of(k * ch, ch)
                    return acc + sq_chunk(r0, ch)

                acc = lax.fori_loop(0, n_full_chunks, body,
                                    jnp.zeros((ch, LANES), jnp.float32))
                out_ref[...] += acc
                if rem > 0:  # static remainder chunk (single-block case only)
                    dd = sq_chunk(n_full_chunks * ch, rem)
                    out_ref[pl.ds(0, rem), :] += dd

        if last_partial:
            @pl.when(gidx == n_blocks - 1)
            def _():
                # Final partial block: its VMEM tail past the true row count
                # holds unspecified data, so mask rows >= valid_last.  Runs at
                # most once per core; only valid chunks are touched.
                def body(k, acc):
                    r0 = pl.multiple_of(k * ch, ch)
                    sq = sq_chunk(r0, ch)
                    row = lax.broadcasted_iota(jnp.int32, (ch, LANES), 0) + r0
                    return acc + jnp.where(row < valid_last, sq,
                                           jnp.float32(0.0))

                acc = lax.fori_loop(0, n_valid_chunks, body,
                                    jnp.zeros((ch, LANES), jnp.float32))
                out_ref[...] += acc

    return kernel


def proto_align_loss(gt: jax.Array, P: jax.Array, *,
                     _max_rows_override: int | None = None) -> jax.Array:
    """MSE loss (mean over all elements), matching nn.MSELoss()(gt, P)."""
    assert gt.shape == P.shape, "gt and P must have the same shape"
    n_elems = gt.size

    max_rows, vmem_limit, n_cores = _chip_config()
    if _max_rows_override is not None:  # test hook (exercise multi-block path)
        assert _max_rows_override % 8 == 0
        max_rows = _max_rows_override

    gt_flat = gt.reshape(-1)
    p_flat = P.reshape(-1)

    # Lane-dense (rows, 128) view.  The flat reshape is a bitcast; only when
    # the element count is not a multiple of 128 do we pay a zero-pad copy
    # (pad elements are zero in both inputs -> contribute 0 to the sum).
    if n_elems % LANES != 0:
        # TODO(synk): the rare ragged case still pays one full-array pad copy.
        padded = _round_up(n_elems, LANES)
        gt_flat = jnp.pad(gt_flat, (0, padded - n_elems))
        p_flat = jnp.pad(p_flat, (0, padded - n_elems))
    rows = gt_flat.size // LANES

    # Row tile: either the whole array (always layout-legal, single block) or
    # the per-generation maximum (multiple of 64 -> divisible by (8,128)).
    if rows <= max_rows:
        row_tile = rows
    else:
        row_tile = max_rows
    ch = min(64, row_tile)                       # chunk rows for the inner loop
    n_full_chunks = row_tile // ch
    rem = row_tile - n_full_chunks * ch

    n_blocks = _cdiv(rows, row_tile)
    valid_last = rows - (n_blocks - 1) * row_tile
    last_partial = valid_last != row_tile
    # The masked tail branch assumes whole-chunk coverage of the row tile.
    assert (not last_partial) or (rem == 0 and row_tile % ch == 0)

    n_parallel = n_cores if (n_cores > 1 and n_blocks >= n_cores) else 1
    n_steps = _cdiv(n_blocks, n_parallel)

    gt2d = gt_flat.reshape(rows, LANES)
    p2d = p_flat.reshape(rows, LANES)

    # Clamp so that round-up "dummy" steps on the core-parallel axis never DMA
    # out of bounds; the kernel skips their accumulation (gidx >= n_blocks).
    if n_parallel * n_steps == n_blocks:
        in_map = lambda c, i: (c * n_steps + i, 0)
    else:
        in_map = lambda c, i: (jnp.minimum(c * n_steps + i, n_blocks - 1), 0)

    kernel = _make_kernel(n_steps=n_steps, n_blocks=n_blocks,
                          row_tile=row_tile, ch=ch, rem=rem,
                          valid_last=valid_last, last_partial=last_partial)

    if n_parallel > 1:
        dim_sem = (pltpu.CORE_PARALLEL, pltpu.ARBITRARY)   # v7x: both TCs
    else:
        dim_sem = ("arbitrary", "arbitrary")

    partials = pl.pallas_call(
        kernel,
        out_shape=jax.ShapeDtypeStruct((n_parallel * ch, LANES), jnp.float32),
        grid_spec=pltpu.PrefetchScalarGridSpec(
            num_scalar_prefetch=0,
            grid=(n_parallel, n_steps),
            in_specs=[
                pl.BlockSpec((row_tile, LANES), in_map),
                pl.BlockSpec((row_tile, LANES), in_map),
            ],
            out_specs=pl.BlockSpec((ch, LANES), lambda c, i: (c, 0)),
        ),
        compiler_params=pltpu.CompilerParams(
            dimension_semantics=dim_sem,
            vmem_limit_bytes=vmem_limit,
        ),
    )(gt2d, p2d)

    # Tiny epilogue: cross-lane reduce of the per-core (ch,128) partials and
    # division by the TRUE element count (pad/masked rows contributed 0).
    return (jnp.sum(partials) / jnp.float32(n_elems)).astype(jnp.float32)


if __name__ == "__main__":
    key = jax.random.PRNGKey(0)
    k_gt, k_p, k_gt2, k_p2, k_gt3, k_p3 = jax.random.split(key, 6)

    # Small NCHW-shaped inputs consistent with the module's forward.
    shape = (2, 4, 16, 16)
    gt = jax.random.normal(k_gt, shape, dtype=jnp.float32)
    P = jax.random.normal(k_p, shape, dtype=jnp.float32)
    loss = proto_align_loss(gt, P)
    jax.block_until_ready(loss)
    ref = jnp.mean((gt - P) ** 2)
    assert jnp.allclose(loss, ref, rtol=1e-6, atol=1e-6), (loss, ref)

    # Ragged element count (not a multiple of 128): exercises the pad fallback.
    shape2 = (2, 3, 7, 5)
    gt2 = jax.random.normal(k_gt2, shape2, dtype=jnp.float32)
    P2 = jax.random.normal(k_p2, shape2, dtype=jnp.float32)
    loss2 = proto_align_loss(gt2, P2)
    jax.block_until_ready(loss2)
    ref2 = jnp.mean((gt2 - P2) ** 2)
    assert jnp.allclose(loss2, ref2, rtol=1e-6, atol=1e-6), (loss2, ref2)

    # Multi-block + masked partial-final-block path (no padding), forced via a
    # tiny row tile so it runs at small sizes on any chip.
    shape3 = (5, 4, 128)  # 2560 elements -> 20 rows of 128, tile of 8 rows
    gt3 = jax.random.normal(k_gt3, shape3, dtype=jnp.float32)
    P3 = jax.random.normal(k_p3, shape3, dtype=jnp.float32)
    loss3 = proto_align_loss(gt3, P3, _max_rows_override=8)
    jax.block_until_ready(loss3)
    ref3 = jnp.mean((gt3 - P3) ** 2)
    assert jnp.allclose(loss3, ref3, rtol=1e-6, atol=1e-6), (loss3, ref3)

    print("KERNEL_OK")
</pallas_src>

<mosaic_0001>
module attributes {stable_mosaic.version = 11 : i64} {
  func.func @kernel(%arg0: i32, %arg1: i32, %arg2: memref<16x128xf32, #tpu.memory_space<vmem>>, %arg3: memref<16x128xf32, #tpu.memory_space<vmem>>, %arg4: memref<16x128xf32, #tpu.memory_space<vmem>>) attributes {dimension_semantics = [#tpu.dimension_semantics<arbitrary>, #tpu.dimension_semantics<arbitrary>], iteration_bounds = array<i64: 1, 1>, scalar_prefetch = 0 : i64, scratch_operands = 0 : i64, tpu.core_type = #tpu.core_type<tc>, window_params = [{transform_indices = @transform_0, window_bounds = array<i64: 16, 128>}, {transform_indices = @transform_1, window_bounds = array<i64: 16, 128>}, {transform_indices = @transform_2, window_bounds = array<i64: 16, 128>}]} {
    %c1_i32 = arith.constant 1 : i32
    %0 = arith.muli %arg0, %c1_i32 : i32
    %1 = arith.addi %0, %arg1 : i32
    %c0_i32 = arith.constant 0 : i32
    %2 = arith.cmpi eq, %arg1, %c0_i32 : i32
    %3 = arith.extui %2 : i1 to i32
    %c0_i32_0 = arith.constant 0 : i32
    %4 = arith.cmpi ne, %3, %c0_i32_0 : i32
    scf.if %4 {
      %cst = arith.constant 0.000000e+00 : f32
      %8 = vector.broadcast %cst : f32 to vector<16x128xf32>
      %c0 = arith.constant 0 : index
      %c0_3 = arith.constant 0 : index
      %9 = vector.load %arg4[%c0, %c0_3] : memref<16x128xf32, #tpu.memory_space<vmem>>, vector<16x128xf32>
      tpu.vector_store %arg4[%c0, %c0_3], %8 {strides = array<i32>} : memref<16x128xf32, #tpu.memory_space<vmem>>, vector<16x128xf32>,
    } else {
    }
    %c1_i32_1 = arith.constant 1 : i32
    %5 = arith.cmpi slt, %1, %c1_i32_1 : i32
    %6 = arith.extui %5 : i1 to i32
    %c0_i32_2 = arith.constant 0 : i32
    %7 = arith.cmpi ne, %6, %c0_i32_2 : i32
    scf.if %7 {
      %cst = arith.constant 0.000000e+00 : f32
      %8 = vector.broadcast %cst : f32 to vector<16x128xf32>
      %c0_i32_3 = arith.constant 0 : i32
      %c16_i32 = arith.constant 16 : i32
      %9 = arith.muli %c0_i32_3, %c16_i32 : i32
      %10 = tpu.assume_multiple %9, 16 : i32
      %11 = arith.index_cast %10 : i32 to index
      %c0 = arith.constant 0 : index
      %12 = vector.load %arg2[%11, %c0] : memref<16x128xf32, #tpu.memory_space<vmem>>, vector<16x128xf32>
      %13 = arith.index_cast %10 : i32 to index
      %c0_4 = arith.constant 0 : index
      %14 = vector.load %arg3[%13, %c0_4] : memref<16x128xf32, #tpu.memory_space<vmem>>, vector<16x128xf32>
      %15 = arith.subf %12, %14 : vector<16x128xf32>
      %16 = arith.mulf %15, %15 : vector<16x128xf32>
      %17 = arith.addf %8, %16 : vector<16x128xf32>
      %c1_i32_5 = arith.constant 1 : i32
      %c0_6 = arith.constant 0 : index
      %c0_7 = arith.constant 0 : index
      %18 = vector.load %arg4[%c0_6, %c0_7] : memref<16x128xf32, #tpu.memory_space<vmem>>, vector<16x128xf32>
      %19 = arith.addf %18, %17 : vector<16x128xf32>
      %c0_8 = arith.constant 0 : index
      %c0_9 = arith.constant 0 : index
      %20 = vector.load %arg4[%c0_8, %c0_9] : memref<16x128xf32, #tpu.memory_space<vmem>>, vector<16x128xf32>
      tpu.vector_store %arg4[%c0_8, %c0_9], %19 {strides = array<i32>} : memref<16x128xf32, #tpu.memory_space<vmem>>, vector<16x128xf32>,
    } else {
    }
    return
  }
  func.func @transform_0(%arg0: i32, %arg1: i32) -> (i32, i32) {
    %c1_i32 = arith.constant 1 : i32
    %0 = arith.muli %arg0, %c1_i32 : i32
    %1 = arith.addi %0, %arg1 : i32
    %c0_i32 = arith.constant 0 : i32
    %c0_i32_0 = arith.constant 0 : i32
    return %1, %c0_i32 : i32, i32
  }
  func.func @transform_1(%arg0: i32, %arg1: i32) -> (i32, i32) {
    %c1_i32 = arith.constant 1 : i32
    %0 = arith.muli %arg0, %c1_i32 : i32
    %1 = arith.addi %0, %arg1 : i32
    %c0_i32 = arith.constant 0 : i32
    %c0_i32_0 = arith.constant 0 : i32
    return %1, %c0_i32 : i32, i32
  }
  func.func @transform_2(%arg0: i32, %arg1: i32) -> (i32, i32) {
    %c0_i32 = arith.constant 0 : i32
    %c0_i32_0 = arith.constant 0 : i32
    return %arg0, %c0_i32 : i32, i32
  }
}

</mosaic_0001>

<llo_original>
// kernel: tpu_custom_call.1
$region0: #{tpu_custom_call.1}
  #allocation0 [shape = 'u32[]', space=smem, size = 0x4, offset = 0x4, fixed_abs, tag = 'smem constant byte address 0x4 - core index']
  #allocation1 [shape = 'u32[144,128]{1,0:T(1,128)}', space=vmem, size = 0x12000, scoped, tag = 'internal scratch']
  %s0 = inlined_call_operand.hbm [shape: f32[16,128], index: 0, kind: input, shape index: {}]
  %s1 = inlined_call_operand.hbm [shape: f32[16,128], index: 1, kind: input, shape index: {}]
  %s2 = inlined_call_operand.hbm [shape: f32[16,128], index: 2, kind: output, shape index: {}]
  %s3 = sld [smem:[#allocation0]]
  $region34: #{tpu_custom_call.1} parent=0
    _
  %s5 = ssub.s32 1, %s3
  %s6 = scalar_select 0, %s5, %s3
  $region1: #{tpu_custom_call.1} parent=0
    #allocation2 [shape = 'u8[8192]{0}', space=vmem, size = 0x2000, scoped, tag = 'input window, operand 0, single buffered']
    #allocation3 [shape = 's32[1]{0}', space=sflag, size = 0x4, scoped, tag = 'scoped memory for tpu_custom_call.1']
    #allocation4 [shape = 's32[1]{0}', space=sflag, size = 0x4, scoped, tag = 'scoped memory for tpu_custom_call.1']
    #allocation5 [shape = 'u8[8192]{0}', space=vmem, size = 0x2000, scoped, tag = 'input window, operand 1, single buffered']
    #allocation6 [shape = 's32[1]{0}', space=sflag, size = 0x4, scoped, tag = 'scoped memory for tpu_custom_call.1']
    #allocation7 [shape = 'u8[8192]{0}', space=vmem, size = 0x2000, scoped, tag = 'output window, operand 0, single buffered']
    %7 = vsyncpa [#allocation3], 0
    %8 = vsyncpa [#allocation6], 0
    %9 = vsyncpa [#allocation4], 0
    // Predicated region
    $region2: #{tpu_custom_call.1} parent=1 // pred_check
      _
    $region3: #{tpu_custom_call.1} parent=1 // pred_check_branch
      %11 = sbr.rel (0) target = $region5
    $region4: #{tpu_custom_call.1} parent=1 // pred_region
      %s12 = sadd.s32 0, 0
      %s13 = smul.u32 2, %s12
      %s15 = ssub.s32 256, 256
      %16 = vsyncadd [#allocation3], %s15
      %s17 = smul.addr %s13, 128
      %s18 = scalar_lea.hbm %s0, %s17
      %s19 = sshll.u32 [#allocation2], 4
      %s20 = int_to_ptr.vmem [resolvable:$true] %s19
      %25 = dma.hbm_to_vmem [thread:$0]  %s18, 256, %s20, [#allocation3], 128, 128, 8
    $region5: #{tpu_custom_call.1} parent=1 // pred_fallthru
      _
    // Predicated region
    $region6: #{tpu_custom_call.1} parent=1 // pred_check
      _
    $region7: #{tpu_custom_call.1} parent=1 // pred_check_branch
      %27 = sbr.rel (0) target = $region9
    $region8: #{tpu_custom_call.1} parent=1 // pred_region
      %s28 = sadd.s32 0, 0
      %s29 = smul.u32 2, %s28
      %s31 = ssub.s32 256, 256
      %32 = vsyncadd [#allocation6], %s31
      %s33 = smul.addr %s29, 128
      %s34 = scalar_lea.hbm %s1, %s33
      %s35 = sshll.u32 [#allocation5], 4
      %s36 = int_to_ptr.vmem [resolvable:$true] %s35
      %41 = dma.hbm_to_vmem [thread:$0]  %s34, 256, %s36, [#allocation6], 128, 128, 8
    $region9: #{tpu_custom_call.1} parent=1 // pred_fallthru
      _
    // Predicated region
    $region10: #{tpu_custom_call.1} parent=1 // pred_check
      _
    $region11: #{tpu_custom_call.1} parent=1 // pred_check_branch
      %43 = sbr.rel (0) target = $region13
    $region12: #{tpu_custom_call.1} parent=1 // pred_region
      %44 = dma.done [#allocation3], 256
    $region13: #{tpu_custom_call.1} parent=1 // pred_fallthru
      _
    // Predicated region
    $region14: #{tpu_custom_call.1} parent=1 // pred_check
      _
    $region15: #{tpu_custom_call.1} parent=1 // pred_check_branch
      %46 = sbr.rel (0) target = $region17
    $region16: #{tpu_custom_call.1} parent=1 // pred_region
      %47 = dma.done [#allocation6], 256
    $region17: #{tpu_custom_call.1} parent=1 // pred_fallthru
      _
    %s48 = sadd.s32 0, 0
    %s49 = smul.u32 2, %s48
    %s50 = sadd.s32 0, 0
    %s51 = smul.u32 2, %s50
    %s52 = sadd.s32 0, 0
    %p53 = scmp.eq.s32.totalorder 0, 0
    // Predicated region
    $region18: #{tpu_custom_call.1} parent=1 // pred_check
      %p54 = pneg %p53
    $region19: #{tpu_custom_call.1} parent=1 // pred_check_branch
      %56 = sbr.rel (%p54) target = $region21
    $region20: #{tpu_custom_call.1} parent=1 // pred_region
      %57 = vst [vmem:[#allocation7] sm:$0xff] 0.0
      %58 = vst [vmem:[#allocation7 + $0x8] sm:$0xff] 0.0
    $region21: #{tpu_custom_call.1} parent=1 // pred_fallthru
      _
    %p59 = scmp.lt.s32.totalorder %s52, 1
    // Predicated region
    $region22: #{tpu_custom_call.1} parent=1 // pred_check
      %p60 = pneg %p59
    $region23: #{tpu_custom_call.1} parent=1 // pred_check_branch
      %62 = sbr.rel (%p60) target = $region25
    $region24: #{tpu_custom_call.1} parent=1 // pred_region
      %v63 = vld [vmem:[#allocation2] sm:$0xff]
      %v64 = vld [vmem:[#allocation2 + $0x8] sm:$0xff]
      %v65 = vld [vmem:[#allocation5] sm:$0xff]
      %v66 = vld [vmem:[#allocation5 + $0x8] sm:$0xff]
      %v67 = vsub.f32 %v63, %v65
      %v68 = vsub.f32 %v64, %v66
      %v69 = vmul.f32 %v67, %v67
      %v70 = vmul.f32 %v68, %v68
      %v71 = vadd.f32 %v69, 0.0
      %v72 = vadd.f32 %v70, 0.0
      %v73 = vld [vmem:[#allocation7] sm:$0xff]
      %v74 = vld [vmem:[#allocation7 + $0x8] sm:$0xff]
      %v75 = vadd.f32 %v73, %v71
      %v76 = vadd.f32 %v74, %v72
      %77 = vst [vmem:[#allocation7] sm:$0xff] %v75
      %78 = vst [vmem:[#allocation7 + $0x8] sm:$0xff] %v76
    $region25: #{tpu_custom_call.1} parent=1 // pred_fallthru
      _
    // Predicated region
    $region26: #{tpu_custom_call.1} parent=1 // pred_check
      _
    $region27: #{tpu_custom_call.1} parent=1 // pred_check_branch
      %80 = sbr.rel (0) target = $region29
    $region28: #{tpu_custom_call.1} parent=1 // pred_region
      %s82 = ssub.s32 256, 256
      %83 = vsyncadd [#allocation4], %s82
      %s84 = sshll.u32 [#allocation7], 4
      %s85 = int_to_ptr.vmem [resolvable:$true] %s84
      %90 = dma.vmem_to_hbm [thread:$0]  %s85, 256, %s2, [#allocation4], 128, 128, 8
    $region29: #{tpu_custom_call.1} parent=1 // pred_fallthru
      _
    // Predicated region
    $region30: #{tpu_custom_call.1} parent=1 // pred_check
      _
    $region31: #{tpu_custom_call.1} parent=1 // pred_check_branch
      %92 = sbr.rel (0) target = $region33
    $region32: #{tpu_custom_call.1} parent=1 // pred_region
      %93 = dma.done [#allocation4], 256
    $region33: #{tpu_custom_call.1} parent=1 // pred_fallthru
      _
    %94 = vsyncpa [#allocation3], 1
    %95 = vsyncpa [#allocation6], 1
    %96 = vsyncpa [#allocation4], 1

</llo_original>
